<compile_context>
chip_gen: v5e
topology: v5e:2x2
jax: 0.10.0
libtpu: 0.0.40
codegen_flags: <defaults>
</compile_context>

<pallas_src>
import functools

import jax
import jax.numpy as jnp
from jax.experimental import pallas as pl
from jax.experimental.pallas import tpu as pltpu


# ----------------------------- config (synthetic, small) --------------------
D_MODEL = 128
N_HEADS = 4
KV_N_HEADS = 2
HEAD_DIM = D_MODEL // N_HEADS          # 32
CLIP_QKV = 8.0
ROPE_THETA = 10000.0
LN_EPS = 1e-5
SEQ_LEN = 8

Q_SIZE = N_HEADS * HEAD_DIM            # 128
KV_SIZE = KV_N_HEADS * HEAD_DIM        # 64
QKV_OUT = Q_SIZE + 2 * KV_SIZE         # 256
SCALE = HEAD_DIM ** -0.5

assert N_HEADS % KV_N_HEADS == 0


# ----------------------------- fused Pallas kernel --------------------------
def fused_norm_attn_kernel(hs_ref, cosq_ref, sinq_ref, wqkv_ref, wout_ref,
                           ln1_w_ref, ln1_b_ref, ln2_w_ref, ln2_b_ref,
                           hs_out_ref, res_out_ref, *,
                           n_heads, n_kv_heads, head_dim,
                           clip_qkv, eps, scale):
    f32 = jnp.float32
    bf16 = jnp.bfloat16
    x = hs_ref[...].astype(f32)                           # (T, D) residual
    T, D = x.shape
    hd = head_dim
    hh = hd // 2
    q_size = n_heads * hd
    kv_size = n_kv_heads * hd
    group = n_heads // n_kv_heads

    # ---- LayerNorm 1 (f32 VPU math) ----
    mean = jnp.mean(x, axis=-1, keepdims=True)
    var = jnp.mean((x - mean) ** 2, axis=-1, keepdims=True)
    h = (x - mean) * jax.lax.rsqrt(var + eps)
    h = h * ln1_w_ref[...].astype(f32) + ln1_b_ref[...].astype(f32)

    # ---- Wqkv projection + clip: bf16 operands into MXU, f32 accumulate ----
    qkv = jnp.dot(h.astype(bf16), wqkv_ref[...], preferred_element_type=f32)
    qkv = jnp.clip(qkv, -clip_qkv, clip_qkv)

    # Heads live on the lane axis; slice statically (no transposes).
    # Softmax scale folded into q once (RoPE is a rotation, so order is fine).
    q = qkv[:, :q_size] * scale                           # (T, q_size) f32
    k = qkv[:, q_size:q_size + kv_size]                   # (T, kv_size)
    v = qkv[:, q_size + kv_size:]                         # (T, kv_size)

    # ---- full-width neox RoPE (hoisted out of the head loop) ----
    # cos_q per 32-lane head block: [cos | cos]; sin_q: [-sin | +sin] (sign
    # baked in the wrapper) so the rotation is q*cos + swap_halves(q)*sin.
    cos_q = cosq_ref[...].astype(f32)                     # (T, q_size)
    sin_q = sinq_ref[...].astype(f32)                     # (T, q_size)

    def swap_halves(t, n):
        # Swap the two 16-lane halves inside each head's 32-lane block
        # (cheap in-vreg lane shuffle; single concatenate).
        parts = []
        for i in range(n):
            base = i * hd
            parts.append(t[:, base + hh:base + hd])
            parts.append(t[:, base:base + hh])
        return jnp.concatenate(parts, axis=-1)

    q_rot = q * cos_q + swap_halves(q, n_heads) * sin_q
    k_rot = (k * cos_q[:, :kv_size]
             + swap_halves(k, n_kv_heads) * sin_q[:, :kv_size])

    q_bf = q_rot.astype(bf16)
    k_bf = k_rot.astype(bf16)
    v_bf = v.astype(bf16)

    # ---- causal mask (shared across heads) ----
    row = jax.lax.broadcasted_iota(jnp.int32, (T, T), 0)
    col = jax.lax.broadcasted_iota(jnp.int32, (T, T), 1)
    causal = col <= row
    neg_inf = f32(-jnp.inf)

    dnum = (((1,), (1,)), ((), ()))                       # contract last dims

    # ---- per-head attention; outputs collected into one (T, q_size) buffer
    # TODO(synk): at real n_heads=48 replace the static unroll with a
    # group-batched dot_general / fori_loop to bound vreg live ranges.
    head_out = []
    for hq in range(n_heads):
        g = hq // group                                   # GQA kv head
        qh = q_bf[:, hq * hd:(hq + 1) * hd]               # (T, hd) contiguous
        kh = k_bf[:, g * hd:(g + 1) * hd]
        # Single MXU push per head, contraction depth = head_dim (no k.T).
        s = jax.lax.dot_general(qh, kh, dnum, preferred_element_type=f32)
        s = jnp.where(causal, s, neg_inf)
        m = jnp.max(s, axis=-1, keepdims=True)
        p = jnp.exp(s - m)
        l = jnp.sum(p, axis=-1, keepdims=True)
        o = jnp.dot(p.astype(bf16), v_bf[:, g * hd:(g + 1) * hd],
                    preferred_element_type=f32)           # (T, hd) f32
        head_out.append(o * pl.reciprocal(l, approx=True))  # EUP, not VALU div

    attn_out = jnp.concatenate(head_out, axis=-1)         # (T, q_size) dense

    # ---- single out_proj matmul (K = q_size = 128), bf16 -> f32 acc ----
    attn_proj = jnp.dot(attn_out.astype(bf16), wout_ref[...],
                        preferred_element_type=f32)       # (T, D)

    # ---- residual add + LayerNorm 2 (fused, f32) ----
    r = x + attn_proj
    res_out_ref[...] = r.astype(res_out_ref.dtype)
    mean2 = jnp.mean(r, axis=-1, keepdims=True)
    var2 = jnp.mean((r - mean2) ** 2, axis=-1, keepdims=True)
    rn = (r - mean2) * jax.lax.rsqrt(var2 + eps)
    hs_out_ref[...] = (rn * ln2_w_ref[...].astype(f32)
                       + ln2_b_ref[...].astype(f32)).astype(hs_out_ref.dtype)


# ----------------------------- wrapper ---------------------------------------
def rope_cos_sin(position_ids, head_dim, theta):
    # Equivalent to vLLM's cached cos_sin table (tiny, one-off host compute).
    inv_freq = 1.0 / (theta ** (jnp.arange(0, head_dim, 2, dtype=jnp.float32)
                                / head_dim))
    freqs = position_ids.astype(jnp.float32)[:, None] * inv_freq[None, :]
    return jnp.cos(freqs), jnp.sin(freqs)                 # each (T, hd/2)


def rope_tables_full_width(position_ids, head_dim, theta, n_heads):
    """Lane-dense (T, q_size) neox tables; sign baked into sin.

    Per 32-lane head block:  cos table = [cos | cos],  sin table = [-sin | +sin].
    The k tables are just the leading kv_size lanes of these (same pattern).
    """
    cos, sin = rope_cos_sin(position_ids, head_dim, theta)
    cos_q = jnp.tile(cos, (1, 2 * n_heads))                       # (T, q_size)
    sin_q = jnp.tile(jnp.concatenate([-sin, sin], axis=-1), (1, n_heads))
    return cos_q, sin_q


def dbrx_fused_norm_attention(position_ids, hidden_states, params):
    """Returns (hidden_states, residual), both (T, d_model)."""
    T, D = hidden_states.shape
    cos_q, sin_q = rope_tables_full_width(position_ids, HEAD_DIM, ROPE_THETA,
                                          N_HEADS)

    kernel = functools.partial(
        fused_norm_attn_kernel,
        n_heads=N_HEADS, n_kv_heads=KV_N_HEADS, head_dim=HEAD_DIM,
        clip_qkv=CLIP_QKV, eps=LN_EPS, scale=SCALE)

    vmem = pl.BlockSpec(memory_space=pltpu.MemorySpace.VMEM)
    hs_out, res_out = pl.pallas_call(
        kernel,
        out_shape=(jax.ShapeDtypeStruct((T, D), hidden_states.dtype),
                   jax.ShapeDtypeStruct((T, D), hidden_states.dtype)),
        in_specs=[vmem] * 9,
        out_specs=(vmem, vmem),
        # hidden_states buffer reused for the residual output (no extra HBM).
        input_output_aliases={0: 1},
    )(hidden_states, cos_q, sin_q,
      params["wqkv"], params["wout"],
      params["ln1_w"].reshape(1, D), params["ln1_b"].reshape(1, D),
      params["ln2_w"].reshape(1, D), params["ln2_b"].reshape(1, D))
    return hs_out, res_out


# ----------------------------- pure-JAX reference ----------------------------
def reference(position_ids, hidden_states, params):
    x = hidden_states.astype(jnp.float32)
    T = x.shape[0]
    wqkv = params["wqkv"].astype(jnp.float32)
    wout = params["wout"].astype(jnp.float32)

    def ln(v, w, b):
        mu = jnp.mean(v, -1, keepdims=True)
        var = jnp.mean((v - mu) ** 2, -1, keepdims=True)
        return (v - mu) / jnp.sqrt(var + LN_EPS) * w + b

    h = ln(x, params["ln1_w"], params["ln1_b"])
    qkv = jnp.clip(h @ wqkv, -CLIP_QKV, CLIP_QKV)
    q, k, v = (qkv[:, :Q_SIZE], qkv[:, Q_SIZE:Q_SIZE + KV_SIZE],
               qkv[:, Q_SIZE + KV_SIZE:])
    cos, sin = rope_cos_sin(position_ids, HEAD_DIM, ROPE_THETA)

    def rope(t, nh):
        t = t.reshape(T, nh, HEAD_DIM)
        t1, t2 = t[..., :HEAD_DIM // 2], t[..., HEAD_DIM // 2:]
        o1 = t1 * cos[:, None] - t2 * sin[:, None]
        o2 = t2 * cos[:, None] + t1 * sin[:, None]
        return jnp.concatenate([o1, o2], -1).reshape(T, nh * HEAD_DIM)

    q = rope(q, N_HEADS)
    k = rope(k, KV_N_HEADS)
    qh = q.reshape(T, N_HEADS, HEAD_DIM).transpose(1, 0, 2)
    kh = k.reshape(T, KV_N_HEADS, HEAD_DIM).transpose(1, 0, 2)
    vh = v.reshape(T, KV_N_HEADS, HEAD_DIM).transpose(1, 0, 2)
    rep = N_HEADS // KV_N_HEADS
    kh = jnp.repeat(kh, rep, axis=0)
    vh = jnp.repeat(vh, rep, axis=0)
    s = jnp.einsum("htd,hsd->hts", qh, kh) * SCALE
    mask = jnp.tril(jnp.ones((T, T), bool))
    s = jnp.where(mask[None], s, -jnp.inf)
    p = jax.nn.softmax(s, axis=-1)
    o = jnp.einsum("hts,hsd->htd", p, vh)
    o = o.transpose(1, 0, 2).reshape(T, D_MODEL)
    r = x + o @ wout
    return ln(r, params["ln2_w"], params["ln2_b"]), r


# ----------------------------- main ------------------------------------------
if __name__ == "__main__":
    key = jax.random.PRNGKey(0)
    k_h, k_wqkv, k_wout, k_ln1, k_ln2 = jax.random.split(key, 5)

    params = {
        # Projection weights stored bf16: MXU-native operands, half the
        # HBM/VMEM bytes.  LN params stay f32 (VPU math).
        "wqkv": (0.02 * jax.random.normal(k_wqkv, (D_MODEL, QKV_OUT),
                                          jnp.float32)).astype(jnp.bfloat16),
        "wout": (0.02 * jax.random.normal(k_wout, (D_MODEL, D_MODEL),
                                          jnp.float32)).astype(jnp.bfloat16),
        "ln1_w": jnp.ones((D_MODEL,), jnp.float32)
                 + 0.01 * jax.random.normal(k_ln1, (D_MODEL,), jnp.float32),
        "ln1_b": jnp.zeros((D_MODEL,), jnp.float32),
        "ln2_w": jnp.ones((D_MODEL,), jnp.float32)
                 + 0.01 * jax.random.normal(k_ln2, (D_MODEL,), jnp.float32),
        "ln2_b": jnp.zeros((D_MODEL,), jnp.float32),
    }

    hidden_states = jax.random.normal(k_h, (SEQ_LEN, D_MODEL), jnp.float32)
    position_ids = jnp.arange(SEQ_LEN, dtype=jnp.int32)

    hs, res = jax.jit(dbrx_fused_norm_attention)(position_ids, hidden_states,
                                                 params)
    jax.block_until_ready((hs, res))

    assert hs.shape == (SEQ_LEN, D_MODEL) and res.shape == (SEQ_LEN, D_MODEL)
    hs_ref, res_ref = reference(position_ids, hidden_states, params)
    assert bool(jnp.allclose(hs, hs_ref, atol=3e-2, rtol=3e-2)), "hs mismatch"
    assert bool(jnp.allclose(res, res_ref, atol=3e-2, rtol=3e-2)), "res mismatch"
    print("KERNEL_OK")
</pallas_src>

<mosaic_0001>
module attributes {stable_mosaic.version = 11 : i64} {
  func.func @fused_norm_attn_kernel(%arg0: memref<8x128xf32, #tpu.memory_space<vmem>>, %arg1: memref<8x128xf32, #tpu.memory_space<vmem>>, %arg2: memref<8x128xf32, #tpu.memory_space<vmem>>, %arg3: memref<128x256xbf16, #tpu.memory_space<vmem>>, %arg4: memref<128x128xbf16, #tpu.memory_space<vmem>>, %arg5: memref<1x128xf32, #tpu.memory_space<vmem>>, %arg6: memref<1x128xf32, #tpu.memory_space<vmem>>, %arg7: memref<1x128xf32, #tpu.memory_space<vmem>>, %arg8: memref<1x128xf32, #tpu.memory_space<vmem>>, %arg9: memref<8x128xf32, #tpu.memory_space<vmem>>, %arg10: memref<8x128xf32, #tpu.memory_space<vmem>>) attributes {dimension_semantics = [], scalar_prefetch = 0 : i64, scratch_operands = 0 : i64, tpu.core_type = #tpu.core_type<tc>} {
    %c0 = arith.constant 0 : index
    %c0_0 = arith.constant 0 : index
    %0 = vector.load %arg0[%c0, %c0_0] : memref<8x128xf32, #tpu.memory_space<vmem>>, vector<8x128xf32>
    %cst = arith.constant dense<0.000000e+00> : vector<8xf32>
    %1 = vector.multi_reduction <add>, %0, %cst [1] : vector<8x128xf32> to vector<8xf32>
    %2 = vector.shape_cast %1 : vector<8xf32> to vector<8x1xf32>
    %cst_1 = arith.constant 1.280000e+02 : f32
    %3 = vector.broadcast %cst_1 : f32 to vector<8x1xf32>
    %4 = arith.divf %2, %3 : vector<8x1xf32>
    %5 = vector.broadcast %4 : vector<8x1xf32> to vector<8x128xf32>
    %6 = arith.subf %0, %5 : vector<8x128xf32>
    %7 = arith.mulf %6, %6 : vector<8x128xf32>
    %cst_2 = arith.constant dense<0.000000e+00> : vector<8xf32>
    %8 = vector.multi_reduction <add>, %7, %cst_2 [1] : vector<8x128xf32> to vector<8xf32>
    %9 = vector.shape_cast %8 : vector<8xf32> to vector<8x1xf32>
    %cst_3 = arith.constant 1.280000e+02 : f32
    %10 = vector.broadcast %cst_3 : f32 to vector<8x1xf32>
    %11 = arith.divf %9, %10 : vector<8x1xf32>
    %12 = vector.broadcast %4 : vector<8x1xf32> to vector<8x128xf32>
    %13 = arith.subf %0, %12 : vector<8x128xf32>
    %cst_4 = arith.constant 9.99999974E-6 : f32
    %14 = vector.broadcast %cst_4 : f32 to vector<8x1xf32>
    %15 = arith.addf %11, %14 : vector<8x1xf32>
    %16 = math.rsqrt %15 : vector<8x1xf32>
    %17 = vector.broadcast %16 : vector<8x1xf32> to vector<8x128xf32>
    %18 = arith.mulf %13, %17 : vector<8x128xf32>
    %c0_5 = arith.constant 0 : index
    %c0_6 = arith.constant 0 : index
    %19 = vector.load %arg5[%c0_5, %c0_6] : memref<1x128xf32, #tpu.memory_space<vmem>>, vector<1x128xf32>
    %20 = vector.broadcast %19 : vector<1x128xf32> to vector<8x128xf32>
    %21 = arith.mulf %18, %20 : vector<8x128xf32>
    %c0_7 = arith.constant 0 : index
    %c0_8 = arith.constant 0 : index
    %22 = vector.load %arg6[%c0_7, %c0_8] : memref<1x128xf32, #tpu.memory_space<vmem>>, vector<1x128xf32>
    %23 = vector.broadcast %22 : vector<1x128xf32> to vector<8x128xf32>
    %24 = arith.addf %21, %23 : vector<8x128xf32>
    %25 = arith.truncf %24 : vector<8x128xf32> to vector<8x128xbf16>
    %c0_9 = arith.constant 0 : index
    %c0_10 = arith.constant 0 : index
    %26 = vector.load %arg3[%c0_9, %c0_10] : memref<128x256xbf16, #tpu.memory_space<vmem>>, vector<128x256xbf16>
    %cst_11 = arith.constant dense<0.000000e+00> : vector<8x256xf32>
    %27 = tpu.matmul %25, %26, %cst_11 {dimension_numbers = #tpu.dot_dimension_numbers<[1], [0], [0], [1], [0, 0, 1, 1], [], []>} : vector<8x128xbf16>, vector<128x256xbf16>, vector<8x256xf32> -> vector<8x256xf32>
    %cst_12 = arith.constant -8.000000e+00 : f32
    %cst_13 = arith.constant 8.000000e+00 : f32
    %28 = vector.broadcast %cst_12 : f32 to vector<8x256xf32>
    %29 = arith.maximumf %28, %27 : vector<8x256xf32>
    %30 = vector.broadcast %cst_13 : f32 to vector<8x256xf32>
    %31 = arith.minimumf %30, %29 : vector<8x256xf32>
    %32 = vector.extract_strided_slice %31 {offsets = [0, 0], sizes = [8, 128], strides = [1, 1]} : vector<8x256xf32> to vector<8x128xf32>
    %cst_14 = arith.constant 0.176776692 : f32
    %33 = vector.broadcast %cst_14 : f32 to vector<8x128xf32>
    %34 = arith.mulf %32, %33 : vector<8x128xf32>
    %35 = vector.extract_strided_slice %31 {offsets = [0, 128], sizes = [8, 64], strides = [1, 1]} : vector<8x256xf32> to vector<8x64xf32>
    %36 = vector.extract_strided_slice %31 {offsets = [0, 192], sizes = [8, 64], strides = [1, 1]} : vector<8x256xf32> to vector<8x64xf32>
    %c0_15 = arith.constant 0 : index
    %c0_16 = arith.constant 0 : index
    %37 = vector.load %arg1[%c0_15, %c0_16] : memref<8x128xf32, #tpu.memory_space<vmem>>, vector<8x128xf32>
    %c0_17 = arith.constant 0 : index
    %c0_18 = arith.constant 0 : index
    %38 = vector.load %arg2[%c0_17, %c0_18] : memref<8x128xf32, #tpu.memory_space<vmem>>, vector<8x128xf32>
    %39 = arith.mulf %34, %37 : vector<8x128xf32>
    %40 = vector.extract_strided_slice %34 {offsets = [0, 16], sizes = [8, 16], strides = [1, 1]} : vector<8x128xf32> to vector<8x16xf32>
    %41 = vector.extract_strided_slice %34 {offsets = [0, 0], sizes = [8, 16], strides = [1, 1]} : vector<8x128xf32> to vector<8x16xf32>
    %42 = vector.extract_strided_slice %34 {offsets = [0, 48], sizes = [8, 16], strides = [1, 1]} : vector<8x128xf32> to vector<8x16xf32>
    %43 = vector.extract_strided_slice %34 {offsets = [0, 32], sizes = [8, 16], strides = [1, 1]} : vector<8x128xf32> to vector<8x16xf32>
    %44 = vector.extract_strided_slice %34 {offsets = [0, 80], sizes = [8, 16], strides = [1, 1]} : vector<8x128xf32> to vector<8x16xf32>
    %45 = vector.extract_strided_slice %34 {offsets = [0, 64], sizes = [8, 16], strides = [1, 1]} : vector<8x128xf32> to vector<8x16xf32>
    %46 = vector.extract_strided_slice %34 {offsets = [0, 112], sizes = [8, 16], strides = [1, 1]} : vector<8x128xf32> to vector<8x16xf32>
    %47 = vector.extract_strided_slice %34 {offsets = [0, 96], sizes = [8, 16], strides = [1, 1]} : vector<8x128xf32> to vector<8x16xf32>
    %48 = tpu.concatenate %40, %41, %42, %43, %44, %45, %46, %47 in 1 : vector<8x16xf32>, vector<8x16xf32>, vector<8x16xf32>, vector<8x16xf32>, vector<8x16xf32>, vector<8x16xf32>, vector<8x16xf32>, vector<8x16xf32> -> vector<8x128xf32>
    %49 = arith.mulf %48, %38 : vector<8x128xf32>
    %50 = arith.addf %39, %49 : vector<8x128xf32>
    %51 = vector.extract_strided_slice %37 {offsets = [0, 0], sizes = [8, 64], strides = [1, 1]} : vector<8x128xf32> to vector<8x64xf32>
    %52 = arith.mulf %35, %51 : vector<8x64xf32>
    %53 = vector.extract_strided_slice %35 {offsets = [0, 16], sizes = [8, 16], strides = [1, 1]} : vector<8x64xf32> to vector<8x16xf32>
    %54 = vector.extract_strided_slice %35 {offsets = [0, 0], sizes = [8, 16], strides = [1, 1]} : vector<8x64xf32> to vector<8x16xf32>
    %55 = vector.extract_strided_slice %35 {offsets = [0, 48], sizes = [8, 16], strides = [1, 1]} : vector<8x64xf32> to vector<8x16xf32>
    %56 = vector.extract_strided_slice %35 {offsets = [0, 32], sizes = [8, 16], strides = [1, 1]} : vector<8x64xf32> to vector<8x16xf32>
    %57 = tpu.concatenate %53, %54, %55, %56 in 1 : vector<8x16xf32>, vector<8x16xf32>, vector<8x16xf32>, vector<8x16xf32> -> vector<8x64xf32>
    %58 = vector.extract_strided_slice %38 {offsets = [0, 0], sizes = [8, 64], strides = [1, 1]} : vector<8x128xf32> to vector<8x64xf32>
    %59 = arith.mulf %57, %58 : vector<8x64xf32>
    %60 = arith.addf %52, %59 : vector<8x64xf32>
    %61 = arith.truncf %50 : vector<8x128xf32> to vector<8x128xbf16>
    %62 = arith.truncf %60 : vector<8x64xf32> to vector<8x64xbf16>
    %63 = arith.truncf %36 : vector<8x64xf32> to vector<8x64xbf16>
    %64 = tpu.iota {dimensions = array<i32: 0>} : vector<8x8xi32>
    %65 = tpu.iota {dimensions = array<i32: 1>} : vector<8x8xi32>
    %66 = arith.cmpi sle, %65, %64 : vector<8x8xi32>
    %67 = vector.extract_strided_slice %61 {offsets = [0, 0], sizes = [8, 32], strides = [1, 1]} : vector<8x128xbf16> to vector<8x32xbf16>
    %68 = vector.extract_strided_slice %62 {offsets = [0, 0], sizes = [8, 32], strides = [1, 1]} : vector<8x64xbf16> to vector<8x32xbf16>
    %cst_19 = arith.constant dense<0.000000e+00> : vector<8x8xf32>
    %69 = tpu.matmul %67, %68, %cst_19 {dimension_numbers = #tpu.dot_dimension_numbers<[1], [1], [0], [0], [0, 0, 1, 0], [], []>} : vector<8x32xbf16>, vector<8x32xbf16>, vector<8x8xf32> -> vector<8x8xf32>
    %cst_20 = arith.constant 0xFF800000 : f32
    %70 = vector.broadcast %cst_20 : f32 to vector<8x8xf32>
    %71 = arith.select %66, %69, %70 : vector<8x8xi1>, vector<8x8xf32>
    %cst_21 = arith.constant dense<0xFF800000> : vector<8xf32>
    %72 = vector.multi_reduction <maximumf>, %71, %cst_21 [1] : vector<8x8xf32> to vector<8xf32>
    %73 = vector.shape_cast %72 : vector<8xf32> to vector<8x1xf32>
    %74 = vector.broadcast %73 : vector<8x1xf32> to vector<8x8xf32>
    %75 = arith.subf %71, %74 : vector<8x8xf32>
    %76 = math.exp %75 : vector<8x8xf32>
    %cst_22 = arith.constant dense<0.000000e+00> : vector<8xf32>
    %77 = vector.multi_reduction <add>, %76, %cst_22 [1] : vector<8x8xf32> to vector<8xf32>
    %78 = vector.shape_cast %77 : vector<8xf32> to vector<8x1xf32>
    %79 = arith.truncf %76 : vector<8x8xf32> to vector<8x8xbf16>
    %80 = vector.extract_strided_slice %63 {offsets = [0, 0], sizes = [8, 32], strides = [1, 1]} : vector<8x64xbf16> to vector<8x32xbf16>
    %cst_23 = arith.constant dense<0.000000e+00> : vector<8x32xf32>
    %81 = tpu.matmul %79, %80, %cst_23 {dimension_numbers = #tpu.dot_dimension_numbers<[1], [0], [0], [1], [0, 0, 1, 1], [], []>} : vector<8x8xbf16>, vector<8x32xbf16>, vector<8x32xf32> -> vector<8x32xf32>
    %82 = tpu.reciprocal %78 {approx = true} : vector<8x1xf32> -> vector<8x1xf32>
    %83 = vector.broadcast %82 : vector<8x1xf32> to vector<8x32xf32>
    %84 = arith.mulf %81, %83 : vector<8x32xf32>
    %85 = vector.extract_strided_slice %61 {offsets = [0, 32], sizes = [8, 32], strides = [1, 1]} : vector<8x128xbf16> to vector<8x32xbf16>
    %86 = vector.extract_strided_slice %62 {offsets = [0, 0], sizes = [8, 32], strides = [1, 1]} : vector<8x64xbf16> to vector<8x32xbf16>
    %cst_24 = arith.constant dense<0.000000e+00> : vector<8x8xf32>
    %87 = tpu.matmul %85, %86, %cst_24 {dimension_numbers = #tpu.dot_dimension_numbers<[1], [1], [0], [0], [0, 0, 1, 0], [], []>} : vector<8x32xbf16>, vector<8x32xbf16>, vector<8x8xf32> -> vector<8x8xf32>
    %cst_25 = arith.constant 0xFF800000 : f32
    %88 = vector.broadcast %cst_25 : f32 to vector<8x8xf32>
    %89 = arith.select %66, %87, %88 : vector<8x8xi1>, vector<8x8xf32>
    %cst_26 = arith.constant dense<0xFF800000> : vector<8xf32>
    %90 = vector.multi_reduction <maximumf>, %89, %cst_26 [1] : vector<8x8xf32> to vector<8xf32>
    %91 = vector.shape_cast %90 : vector<8xf32> to vector<8x1xf32>
    %92 = vector.broadcast %91 : vector<8x1xf32> to vector<8x8xf32>
    %93 = arith.subf %89, %92 : vector<8x8xf32>
    %94 = math.exp %93 : vector<8x8xf32>
    %cst_27 = arith.constant dense<0.000000e+00> : vector<8xf32>
    %95 = vector.multi_reduction <add>, %94, %cst_27 [1] : vector<8x8xf32> to vector<8xf32>
    %96 = vector.shape_cast %95 : vector<8xf32> to vector<8x1xf32>
    %97 = arith.truncf %94 : vector<8x8xf32> to vector<8x8xbf16>
    %98 = vector.extract_strided_slice %63 {offsets = [0, 0], sizes = [8, 32], strides = [1, 1]} : vector<8x64xbf16> to vector<8x32xbf16>
    %cst_28 = arith.constant dense<0.000000e+00> : vector<8x32xf32>
    %99 = tpu.matmul %97, %98, %cst_28 {dimension_numbers = #tpu.dot_dimension_numbers<[1], [0], [0], [1], [0, 0, 1, 1], [], []>} : vector<8x8xbf16>, vector<8x32xbf16>, vector<8x32xf32> -> vector<8x32xf32>
    %100 = tpu.reciprocal %96 {approx = true} : vector<8x1xf32> -> vector<8x1xf32>
    %101 = vector.broadcast %100 : vector<8x1xf32> to vector<8x32xf32>
    %102 = arith.mulf %99, %101 : vector<8x32xf32>
    %103 = vector.extract_strided_slice %61 {offsets = [0, 64], sizes = [8, 32], strides = [1, 1]} : vector<8x128xbf16> to vector<8x32xbf16>
    %104 = vector.extract_strided_slice %62 {offsets = [0, 32], sizes = [8, 32], strides = [1, 1]} : vector<8x64xbf16> to vector<8x32xbf16>
    %cst_29 = arith.constant dense<0.000000e+00> : vector<8x8xf32>
    %105 = tpu.matmul %103, %104, %cst_29 {dimension_numbers = #tpu.dot_dimension_numbers<[1], [1], [0], [0], [0, 0, 1, 0], [], []>} : vector<8x32xbf16>, vector<8x32xbf16>, vector<8x8xf32> -> vector<8x8xf32>
    %cst_30 = arith.constant 0xFF800000 : f32
    %106 = vector.broadcast %cst_30 : f32 to vector<8x8xf32>
    %107 = arith.select %66, %105, %106 : vector<8x8xi1>, vector<8x8xf32>
    %cst_31 = arith.constant dense<0xFF800000> : vector<8xf32>
    %108 = vector.multi_reduction <maximumf>, %107, %cst_31 [1] : vector<8x8xf32> to vector<8xf32>
    %109 = vector.shape_cast %108 : vector<8xf32> to vector<8x1xf32>
    %110 = vector.broadcast %109 : vector<8x1xf32> to vector<8x8xf32>
    %111 = arith.subf %107, %110 : vector<8x8xf32>
    %112 = math.exp %111 : vector<8x8xf32>
    %cst_32 = arith.constant dense<0.000000e+00> : vector<8xf32>
    %113 = vector.multi_reduction <add>, %112, %cst_32 [1] : vector<8x8xf32> to vector<8xf32>
    %114 = vector.shape_cast %113 : vector<8xf32> to vector<8x1xf32>
    %115 = arith.truncf %112 : vector<8x8xf32> to vector<8x8xbf16>
    %116 = vector.extract_strided_slice %63 {offsets = [0, 32], sizes = [8, 32], strides = [1, 1]} : vector<8x64xbf16> to vector<8x32xbf16>
    %cst_33 = arith.constant dense<0.000000e+00> : vector<8x32xf32>
    %117 = tpu.matmul %115, %116, %cst_33 {dimension_numbers = #tpu.dot_dimension_numbers<[1], [0], [0], [1], [0, 0, 1, 1], [], []>} : vector<8x8xbf16>, vector<8x32xbf16>, vector<8x32xf32> -> vector<8x32xf32>
    %118 = tpu.reciprocal %114 {approx = true} : vector<8x1xf32> -> vector<8x1xf32>
    %119 = vector.broadcast %118 : vector<8x1xf32> to vector<8x32xf32>
    %120 = arith.mulf %117, %119 : vector<8x32xf32>
    %121 = vector.extract_strided_slice %61 {offsets = [0, 96], sizes = [8, 32], strides = [1, 1]} : vector<8x128xbf16> to vector<8x32xbf16>
    %122 = vector.extract_strided_slice %62 {offsets = [0, 32], sizes = [8, 32], strides = [1, 1]} : vector<8x64xbf16> to vector<8x32xbf16>
    %cst_34 = arith.constant dense<0.000000e+00> : vector<8x8xf32>
    %123 = tpu.matmul %121, %122, %cst_34 {dimension_numbers = #tpu.dot_dimension_numbers<[1], [1], [0], [0], [0, 0, 1, 0], [], []>} : vector<8x32xbf16>, vector<8x32xbf16>, vector<8x8xf32> -> vector<8x8xf32>
    %cst_35 = arith.constant 0xFF800000 : f32
    %124 = vector.broadcast %cst_35 : f32 to vector<8x8xf32>
    %125 = arith.select %66, %123, %124 : vector<8x8xi1>, vector<8x8xf32>
    %cst_36 = arith.constant dense<0xFF800000> : vector<8xf32>
    %126 = vector.multi_reduction <maximumf>, %125, %cst_36 [1] : vector<8x8xf32> to vector<8xf32>
    %127 = vector.shape_cast %126 : vector<8xf32> to vector<8x1xf32>
    %128 = vector.broadcast %127 : vector<8x1xf32> to vector<8x8xf32>
    %129 = arith.subf %125, %128 : vector<8x8xf32>
    %130 = math.exp %129 : vector<8x8xf32>
    %cst_37 = arith.constant dense<0.000000e+00> : vector<8xf32>
    %131 = vector.multi_reduction <add>, %130, %cst_37 [1] : vector<8x8xf32> to vector<8xf32>
    %132 = vector.shape_cast %131 : vector<8xf32> to vector<8x1xf32>
    %133 = arith.truncf %130 : vector<8x8xf32> to vector<8x8xbf16>
    %134 = vector.extract_strided_slice %63 {offsets = [0, 32], sizes = [8, 32], strides = [1, 1]} : vector<8x64xbf16> to vector<8x32xbf16>
    %cst_38 = arith.constant dense<0.000000e+00> : vector<8x32xf32>
    %135 = tpu.matmul %133, %134, %cst_38 {dimension_numbers = #tpu.dot_dimension_numbers<[1], [0], [0], [1], [0, 0, 1, 1], [], []>} : vector<8x8xbf16>, vector<8x32xbf16>, vector<8x32xf32> -> vector<8x32xf32>
    %136 = tpu.reciprocal %132 {approx = true} : vector<8x1xf32> -> vector<8x1xf32>
    %137 = vector.broadcast %136 : vector<8x1xf32> to vector<8x32xf32>
    %138 = arith.mulf %135, %137 : vector<8x32xf32>
    %139 = tpu.concatenate %84, %102, %120, %138 in 1 : vector<8x32xf32>, vector<8x32xf32>, vector<8x32xf32>, vector<8x32xf32> -> vector<8x128xf32>
    %140 = arith.truncf %139 : vector<8x128xf32> to vector<8x128xbf16>
    %c0_39 = arith.constant 0 : index
    %c0_40 = arith.constant 0 : index
    %141 = vector.load %arg4[%c0_39, %c0_40] : memref<128x128xbf16, #tpu.memory_space<vmem>>, vector<128x128xbf16>
    %cst_41 = arith.constant dense<0.000000e+00> : vector<8x128xf32>
    %142 = tpu.matmul %140, %141, %cst_41 {dimension_numbers = #tpu.dot_dimension_numbers<[1], [0], [0], [1], [0, 0, 1, 1], [], []>} : vector<8x128xbf16>, vector<128x128xbf16>, vector<8x128xf32> -> vector<8x128xf32>
    %143 = arith.addf %0, %142 : vector<8x128xf32>
    %c0_42 = arith.constant 0 : index
    %c0_43 = arith.constant 0 : index
    %144 = vector.load %arg10[%c0_42, %c0_43] : memref<8x128xf32, #tpu.memory_space<vmem>>, vector<8x128xf32>
    tpu.vector_store %arg10[%c0_42, %c0_43], %143 {strides = array<i32>} : memref<8x128xf32, #tpu.memory_space<vmem>>, vector<8x128xf32>,
    %cst_44 = arith.constant dense<0.000000e+00> : vector<8xf32>
    %145 = vector.multi_reduction <add>, %143, %cst_44 [1] : vector<8x128xf32> to vector<8xf32>
    %146 = vector.shape_cast %145 : vector<8xf32> to vector<8x1xf32>
    %cst_45 = arith.constant 1.280000e+02 : f32
    %147 = vector.broadcast %cst_45 : f32 to vector<8x1xf32>
    %148 = arith.divf %146, %147 : vector<8x1xf32>
    %149 = vector.broadcast %148 : vector<8x1xf32> to vector<8x128xf32>
    %150 = arith.subf %143, %149 : vector<8x128xf32>
    %151 = arith.mulf %150, %150 : vector<8x128xf32>
    %cst_46 = arith.constant dense<0.000000e+00> : vector<8xf32>
    %152 = vector.multi_reduction <add>, %151, %cst_46 [1] : vector<8x128xf32> to vector<8xf32>
    %153 = vector.shape_cast %152 : vector<8xf32> to vector<8x1xf32>
    %cst_47 = arith.constant 1.280000e+02 : f32
    %154 = vector.broadcast %cst_47 : f32 to vector<8x1xf32>
    %155 = arith.divf %153, %154 : vector<8x1xf32>
    %156 = vector.broadcast %148 : vector<8x1xf32> to vector<8x128xf32>
    %157 = arith.subf %143, %156 : vector<8x128xf32>
    %cst_48 = arith.constant 9.99999974E-6 : f32
    %158 = vector.broadcast %cst_48 : f32 to vector<8x1xf32>
    %159 = arith.addf %155, %158 : vector<8x1xf32>
    %160 = math.rsqrt %159 : vector<8x1xf32>
    %161 = vector.broadcast %160 : vector<8x1xf32> to vector<8x128xf32>
    %162 = arith.mulf %157, %161 : vector<8x128xf32>
    %c0_49 = arith.constant 0 : index
    %c0_50 = arith.constant 0 : index
    %163 = vector.load %arg7[%c0_49, %c0_50] : memref<1x128xf32, #tpu.memory_space<vmem>>, vector<1x128xf32>
    %164 = vector.broadcast %163 : vector<1x128xf32> to vector<8x128xf32>
    %165 = arith.mulf %162, %164 : vector<8x128xf32>
    %c0_51 = arith.constant 0 : index
    %c0_52 = arith.constant 0 : index
    %166 = vector.load %arg8[%c0_51, %c0_52] : memref<1x128xf32, #tpu.memory_space<vmem>>, vector<1x128xf32>
    %167 = vector.broadcast %166 : vector<1x128xf32> to vector<8x128xf32>
    %168 = arith.addf %165, %167 : vector<8x128xf32>
    %c0_53 = arith.constant 0 : index
    %c0_54 = arith.constant 0 : index
    %169 = vector.load %arg9[%c0_53, %c0_54] : memref<8x128xf32, #tpu.memory_space<vmem>>, vector<8x128xf32>
    tpu.vector_store %arg9[%c0_53, %c0_54], %168 {strides = array<i32>} : memref<8x128xf32, #tpu.memory_space<vmem>>, vector<8x128xf32>,
    return
  }
}

</mosaic_0001>

<llo_original>
// kernel: tile.19
$region0: #{tile.19}
  %s0 = inlined_call_operand.vmem [shape: f32[8,4,32], index: 0, kind: input, shape index: {}]
  %s1 = inlined_call_operand.vmem [shape: f32[8,128], index: 1, kind: output, shape index: {}]
  $region1: #{tile.19} parent=0
    #allocation0 [shape = 'u8[32768]{0}', space=vmem, size = 0x8000, scoped, tag = 'scoped mem for input reshape']
    %s3 = ssub.s32 16, 1
    %s4 = scalar_lea.vmem %s0, 28
    %v5 = vld [vmem:[%s4] sm:%s3]
    %s6 = scalar_lea.vmem [#allocation0], 56
    %7 = vst [vmem:[%s6] sm:%s3] %v5
    %s8 = scalar_lea.vmem %s0, 24
    %v9 = vld [vmem:[%s8] sm:%s3]
    %s10 = scalar_lea.vmem [#allocation0], 48
    %11 = vst [vmem:[%s10] sm:%s3] %v9
    %s12 = scalar_lea.vmem %s0, 20
    %v13 = vld [vmem:[%s12] sm:%s3]
    %s14 = scalar_lea.vmem [#allocation0], 40
    %15 = vst [vmem:[%s14] sm:%s3] %v13
    %s16 = scalar_lea.vmem %s0, 16
    %v17 = vld [vmem:[%s16] sm:%s3]
    %s18 = scalar_lea.vmem [#allocation0], 32
    %19 = vst [vmem:[%s18] sm:%s3] %v17
    %s20 = scalar_lea.vmem %s0, 12
    %v21 = vld [vmem:[%s20] sm:%s3]
    %s22 = scalar_lea.vmem [#allocation0], 24
    %23 = vst [vmem:[%s22] sm:%s3] %v21
    %s24 = scalar_lea.vmem %s0, 8
    %v25 = vld [vmem:[%s24] sm:%s3]
    %s26 = scalar_lea.vmem [#allocation0], 16
    %27 = vst [vmem:[%s26] sm:%s3] %v25
    %s28 = scalar_lea.vmem %s0, 4
    %v29 = vld [vmem:[%s28] sm:%s3]
    %s30 = scalar_lea.vmem [#allocation0], 8
    %31 = vst [vmem:[%s30] sm:%s3] %v29
    %v32 = vld [vmem:[%s0] sm:%s3]
    %33 = vst [vmem:[#allocation0] sm:%s3] %v32
    %v34 = vld [vmem:[#allocation0] ss:$8 sm:$0xf]
    %v35 = vld [vmem:[#allocation0] ss:$8 sm:$0xf0]
    %vm36 = vcmask 1047556
    %v37 = vsel %vm36, %v35, %v34
    %vm38 = vcmask 261120
    %39 = vst.msk [vmem:[%s1] sm:$0xff] %vm38, %v37
    %s40 = scalar_lea.vmem [#allocation0], 3
    %v41 = vld [vmem:[%s40] ss:$8 sm:$0xf]
    %s42 = scalar_lea.vmem [#allocation0], 3
    %v43 = vld [vmem:[%s42] ss:$8 sm:$0xf0]
    %vm44 = vcmask 1047556
    %v45 = vsel %vm44, %v43, %v41
    %46 = vrot.lane.b32.xlu0 %v45, 96
    %v47 = vpop.permute.xlu0 %46
    %vm48 = vcmask 1048320
    %49 = vst.msk [vmem:[%s1] sm:$0xff] %vm48, %v47
    %s50 = scalar_lea.vmem [#allocation0], 2
    %v51 = vld [vmem:[%s50] ss:$8 sm:$0xf]
    %s52 = scalar_lea.vmem [#allocation0], 2
    %v53 = vld [vmem:[%s52] ss:$8 sm:$0xf0]
    %vm54 = vcmask 1047556
    %v55 = vsel %vm54, %v53, %v51
    %56 = vrot.lane.b32.xlu0 %v55, 64
    %v57 = vpop.permute.xlu0 %56
    %vm58 = vcmask 785920
    %59 = vst.msk [vmem:[%s1] sm:$0xff] %vm58, %v57
    %s60 = scalar_lea.vmem [#allocation0], 1
    %v61 = vld [vmem:[%s60] ss:$8 sm:$0xf]
    %s62 = scalar_lea.vmem [#allocation0], 1
    %v63 = vld [vmem:[%s62] ss:$8 sm:$0xf0]
    %vm64 = vcmask 1047556
    %v65 = vsel %vm64, %v63, %v61
    %66 = vrot.lane.b32.xlu0 %v65, 32
    %v67 = vpop.permute.xlu0 %66
    %vm68 = vcmask 523520
    %69 = vst.msk [vmem:[%s1] sm:$0xff] %vm68, %v67

// kernel: tile.14
$region0: #{tile.14}
  %s0 = inlined_call_operand.vmem [shape: f32[8,8,16], index: 0, kind: input, shape index: {}]
  %s1 = inlined_call_operand.vmem [shape: f32[8,128], index: 1, kind: output, shape index: {}]
  %v2 = vld [vmem:[%s0] ss:$8 sm:$0xf]
  %v3 = vld [vmem:[%s0] ss:$8 sm:$0xf0]
  %vm4 = vcmask 1047556
  %v5 = vsel %vm4, %v3, %v2
  %vm6 = vcmask 130048
  %7 = vst.msk [vmem:[%s1] sm:$0xff] %vm6, %v5
  %s8 = scalar_lea.vmem %s0, 7
  %v9 = vld [vmem:[%s8] ss:$8 sm:$0xf]
  %s10 = scalar_lea.vmem %s0, 7
  %v11 = vld [vmem:[%s10] ss:$8 sm:$0xf0]
  %vm12 = vcmask 1047556
  %v13 = vsel %vm12, %v11, %v9
  %14 = vrot.lane.b32.xlu0 %v13, 112
  %v15 = vpop.permute.xlu0 %14
  %vm16 = vcmask 1048448
  %17 = vst.msk [vmem:[%s1] sm:$0xff] %vm16, %v15
  %s18 = scalar_lea.vmem %s0, 6
  %v19 = vld [vmem:[%s18] ss:$8 sm:$0xf]
  %s20 = scalar_lea.vmem %s0, 6
  %v21 = vld [vmem:[%s20] ss:$8 sm:$0xf0]
  %vm22 = vcmask 1047556
  %v23 = vsel %vm22, %v21, %v19
  %24 = vrot.lane.b32.xlu0 %v23, 96
  %v25 = vpop.permute.xlu0 %24
  %vm26 = vcmask 917248
  %27 = vst.msk [vmem:[%s1] sm:$0xff] %vm26, %v25
  %s28 = scalar_lea.vmem %s0, 5
  %v29 = vld [vmem:[%s28] ss:$8 sm:$0xf]
  %s30 = scalar_lea.vmem %s0, 5
  %v31 = vld [vmem:[%s30] ss:$8 sm:$0xf0]
  %vm32 = vcmask 1047556
  %v33 = vsel %vm32, %v31, %v29
  %34 = vrot.lane.b32.xlu0 %v33, 80
  %v35 = vpop.permute.xlu0 %34
  %vm36 = vcmask 786048
  %37 = vst.msk [vmem:[%s1] sm:$0xff] %vm36, %v35
  %s38 = scalar_lea.vmem %s0, 4
  %v39 = vld [vmem:[%s38] ss:$8 sm:$0xf]
  %s40 = scalar_lea.vmem %s0, 4
  %v41 = vld [vmem:[%s40] ss:$8 sm:$0xf0]
  %vm42 = vcmask 1047556
  %v43 = vsel %vm42, %v41, %v39
  %44 = vrot.lane.b32.xlu0 %v43, 64
  %v45 = vpop.permute.xlu0 %44
  %vm46 = vcmask 654848
  %47 = vst.msk [vmem:[%s1] sm:$0xff] %vm46, %v45
  %s48 = scalar_lea.vmem %s0, 3
  %v49 = vld [vmem:[%s48] ss:$8 sm:$0xf]
  %s50 = scalar_lea.vmem %s0, 3
  %v51 = vld [vmem:[%s50] ss:$8 sm:$0xf0]
  %vm52 = vcmask 1047556
  %v53 = vsel %vm52, %v51, %v49
  %54 = vrot.lane.b32.xlu0 %v53, 48
  %v55 = vpop.permute.xlu0 %54
  %vm56 = vcmask 523648
  %57 = vst.msk [vmem:[%s1] sm:$0xff] %vm56, %v55
  %s58 = scalar_lea.vmem %s0, 2
  %v59 = vld [vmem:[%s58] ss:$8 sm:$0xf]
  %s60 = scalar_lea.vmem %s0, 2
  %v61 = vld [vmem:[%s60] ss:$8 sm:$0xf0]
  %vm62 = vcmask 1047556
  %v63 = vsel %vm62, %v61, %v59
  %64 = vrot.lane.b32.xlu0 %v63, 32
  %v65 = vpop.permute.xlu0 %64
  %vm66 = vcmask 392448
  %67 = vst.msk [vmem:[%s1] sm:$0xff] %vm66, %v65
  %s68 = scalar_lea.vmem %s0, 1
  %v69 = vld [vmem:[%s68] ss:$8 sm:$0xf]
  %s70 = scalar_lea.vmem %s0, 1
  %v71 = vld [vmem:[%s70] ss:$8 sm:$0xf0]
  %vm72 = vcmask 1047556
  %v73 = vsel %vm72, %v71, %v69
  %74 = vrot.lane.b32.xlu0 %v73, 16
  %v75 = vpop.permute.xlu0 %74
  %vm76 = vcmask 261248
  %77 = vst.msk [vmem:[%s1] sm:$0xff] %vm76, %v75

// kernel: dbrx_fused_norm_attention.1
$region0: #{dbrx_fused_norm_attention.1}
  #allocation0 [shape = 'u32[]', space=smem, size = 0x4, offset = 0x4, fixed_abs, tag = 'smem constant byte address 0x4 - core index']
  #allocation1 [shape = 'u32[72,128]{1,0:T(1,128)}', space=vmem, size = 0x9000, scoped, tag = 'internal scratch']
  %s0 = inlined_call_operand.hbm [shape: f32[8,128], index: 0, kind: input, shape index: {}, may-alias: {0,10}]
  %s1 = inlined_call_operand.vmem [shape: f32[8,128], index: 1, kind: input, shape index: {}]
  %s2 = inlined_call_operand.vmem [shape: f32[8,128], index: 2, kind: input, shape index: {}]
  %s3 = inlined_call_operand.vmem [shape: bf16[128,256], index: 3, kind: input, shape index: {}]
  %s4 = inlined_call_operand.vmem [shape: bf16[128,128], index: 4, kind: input, shape index: {}]
  %s5 = inlined_call_operand.vmem [shape: f32[1,128], index: 5, kind: input, shape index: {}]
  %s6 = inlined_call_operand.vmem [shape: f32[1,128], index: 6, kind: input, shape index: {}]
  %s7 = inlined_call_operand.vmem [shape: f32[1,128], index: 7, kind: input, shape index: {}]
  %s8 = inlined_call_operand.vmem [shape: f32[1,128], index: 8, kind: input, shape index: {}]
  %s9 = inlined_call_operand.hbm [shape: f32[8,128], index: 9, kind: output, shape index: {0}]
  %s10 = inlined_call_operand.hbm [shape: f32[8,128], index: 10, kind: output, shape index: {1}, may-alias: {0,10}]
  %11 = xla_tuple %s9, %s10
  %s12 = sld [smem:[#allocation0]]
  $region58: #{dbrx_fused_norm_attention.1} parent=0
    _
  %s14 = ssub.s32 1, %s12
  %s15 = scalar_select 0, %s14, %s12
  $region1: #{dbrx_fused_norm_attention.1} parent=0
    #allocation2 [shape = 'u8[4096]{0}', space=vmem, size = 0x1000, scoped, tag = 'input window, operand 0, single buffered']
    #allocation3 [shape = 's32[1]{0}', space=sflag, size = 0x4, scoped, tag = 'scoped memory for dbrx_fused_norm_attention.1']
    #allocation4 [shape = 's32[1]{0}', space=sflag, size = 0x4, scoped, tag = 'scoped memory for dbrx_fused_norm_attention.1']
    #allocation5 [shape = 'u8[4096]{0}', space=vmem, size = 0x1000, scoped, tag = 'output window, operand 0, single buffered']
    #allocation6 [shape = 'u8[4096]{0}', space=vmem, size = 0x1000, scoped, tag = 'output window, operand 1, single buffered']
    #allocation7 [shape = 's32[1]{0}', space=sflag, size = 0x4, scoped, tag = 'scoped memory for dbrx_fused_norm_attention.1']
    %16 = vsyncpa [#allocation3], 0
    %17 = vsyncpa [#allocation4], 0
    %18 = vsyncpa [#allocation7], 0
    // Predicated region
    $region2: #{dbrx_fused_norm_attention.1} parent=1 // pred_check
      _
    $region3: #{dbrx_fused_norm_attention.1} parent=1 // pred_check_branch
      %20 = sbr.rel (0) target = $region5
    $region4: #{dbrx_fused_norm_attention.1} parent=1 // pred_region
      %22 = vsyncadd [#allocation3], 0
      %s24 = sshll.u32 %s0, 4
      %s25 = int_to_ptr.hbm [resolvable:$true] %s24
      %s26 = sshll.u32 [#allocation2], 4
      %s27 = int_to_ptr.vmem [resolvable:$true] %s26
      %29 = dma.hbm_to_vmem [thread:$0]  %s25, 128, %s27, [#allocation3]
    $region5: #{dbrx_fused_norm_attention.1} parent=1 // pred_fallthru
      _
    // Predicated region
    $region6: #{dbrx_fused_norm_attention.1} parent=1 // pred_check
      _
    $region7: #{dbrx_fused_norm_attention.1} parent=1 // pred_check_branch
      %31 = sbr.rel (0) target = $region9
    $region8: #{dbrx_fused_norm_attention.1} parent=1 // pred_region
      _
    $region9: #{dbrx_fused_norm_attention.1} parent=1 // pred_fallthru
      _
    // Predicated region
    $region10: #{dbrx_fused_norm_attention.1} parent=1 // pred_check
      _
    $region11: #{dbrx_fused_norm_attention.1} parent=1 // pred_check_branch
      %33 = sbr.rel (0) target = $region13
    $region12: #{dbrx_fused_norm_attention.1} parent=1 // pred_region
      _
    $region13: #{dbrx_fused_norm_attention.1} parent=1 // pred_fallthru
      _
    // Predicated region
    $region14: #{dbrx_fused_norm_attention.1} parent=1 // pred_check
      _
    $region15: #{dbrx_fused_norm_attention.1} parent=1 // pred_check_branch
      %35 = sbr.rel (0) target = $region17
    $region16: #{dbrx_fused_norm_attention.1} parent=1 // pred_region
      _
    $region17: #{dbrx_fused_norm_attention.1} parent=1 // pred_fallthru
      _
    // Predicated region
    $region18: #{dbrx_fused_norm_attention.1} parent=1 // pred_check
      _
    $region19: #{dbrx_fused_norm_attention.1} parent=1 // pred_check_branch
      %37 = sbr.rel (0) target = $region21
    $region20: #{dbrx_fused_norm_attention.1} parent=1 // pred_region
      _
    $region21: #{dbrx_fused_norm_attention.1} parent=1 // pred_fallthru
      _
    // Predicated region
    $region22: #{dbrx_fused_norm_attention.1} parent=1 // pred_check
      _
    $region23: #{dbrx_fused_norm_attention.1} parent=1 // pred_check_branch
      %39 = sbr.rel (0) target = $region25
    $region24: #{dbrx_fused_norm_attention.1} parent=1 // pred_region
      _
    $region25: #{dbrx_fused_norm_attention.1} parent=1 // pred_fallthru
      _
    // Predicated region
    $region26: #{dbrx_fused_norm_attention.1} parent=1 // pred_check
      _
    $region27: #{dbrx_fused_norm_attention.1} parent=1 // pred_check_branch
      %41 = sbr.rel (0) target = $region29
    $region28: #{dbrx_fused_norm_attention.1} parent=1 // pred_region
      _
    $region29: #{dbrx_fused_norm_attention.1} parent=1 // pred_fallthru
      _
    // Predicated region
    $region30: #{dbrx_fused_norm_attention.1} parent=1 // pred_check
      _
    $region31: #{dbrx_fused_norm_attention.1} parent=1 // pred_check_branch
      %43 = sbr.rel (0) target = $region33
    $region32: #{dbrx_fused_norm_attention.1} parent=1 // pred_region
      _
    $region33: #{dbrx_fused_norm_attention.1} parent=1 // pred_fallthru
      _
    // Predicated region
    $region34: #{dbrx_fused_norm_attention.1} parent=1 // pred_check
      _
    $region35: #{dbrx_fused_norm_attention.1} parent=1 // pred_check_branch
      %45 = sbr.rel (0) target = $region37
    $region36: #{dbrx_fused_norm_attention.1} parent=1 // pred_region
      _
    $region37: #{dbrx_fused_norm_attention.1} parent=1 // pred_fallthru
      _
    // Predicated region
    $region38: #{dbrx_fused_norm_attention.1} parent=1 // pred_check
      _
    $region39: #{dbrx_fused_norm_attention.1} parent=1 // pred_check_branch
      %47 = sbr.rel (0) target = $region41
    $region40: #{dbrx_fused_norm_attention.1} parent=1 // pred_region
      %49 = dma.done [#allocation3], 128
    $region41: #{dbrx_fused_norm_attention.1} parent=1 // pred_fallthru
      _
    %v51 = vld [vmem:[#allocation2] sm:$0xff]
    %52 = vadd.xlane.f32.xlu0 %v51
    %v53 = vpop.xlane.xlu0 %52
    %v54 = vrcp.pop 128.0
    %v55 = vmul.f32 128.0, %v54
    %v56 = vsub.f32 1.0, %v55
    %v57 = vmul.f32 %v54, %v56
    %v58 = vadd.f32 %v54, %v57
    %vm59 = vweird.f32 %v54
    %v60 = vsel %vm59, %v54, %v58
    %v61 = vmul.f32 %v53, %v60
    %v62 = vsub.f32 %v51, %v61
    %v63 = vmul.f32 %v62, %v62
    %64 = vadd.xlane.f32.xlu0 %v63
    %v65 = vpop.xlane.xlu0 %64
    %v66 = vmul.f32 %v65, %v60
    %v67 = vadd.f32 %v66, 1e-05
    %v68 = vrsqrt.pop %v67
    %v69 = vmul.f32 %v68, %v67
    %v70 = vmul.f32 %v69, %v68
    %v71 = vmul.f32 0.5, %v70
    %v72 = vsub.f32 1.5, %v71
    %v73 = vmul.f32 %v68, %v72
    %vm74 = vweird.f32 %v67
    %vm75 = vweird.f32 %v68
    %vm76 = vmor %vm74, %vm75
    %v77 = vsel %vm76, %v68, %v73
    %v78 = vmul.f32 %v62, %v77
    %v79 = vld [vmem:[%s5] sm:$0x1]
    %v81 = vperm.slane %v79, 0
    %v83 = vmul.f32 %v78, %v81
    %v84 = vld [vmem:[%s6] sm:$0x1]
    %v86 = vperm.slane %v84, 0
    %v88 = vadd.f32 %v83, %v86
    %v89 = vpack.c.bf16 %v88, %v88
    %v90 = vld [vmem:[%s3] sm:$0xff]
    %v91 = vld [vmem:[%s3 + $0x8] sm:$0xff]
    %v92 = vld [vmem:[%s3 + $0x10] sm:$0xff]
    %v93 = vld [vmem:[%s3 + $0x18] sm:$0xff]
    %v94 = vld [vmem:[%s3 + $0x20] sm:$0xff]
    %v95 = vld [vmem:[%s3 + $0x28] sm:$0xff]
    %v96 = vld [vmem:[%s3 + $0x30] sm:$0xff]
    %v97 = vld [vmem:[%s3 + $0x38] sm:$0xff]
    %v98 = vld [vmem:[%s3 + $0x40] sm:$0xff]
    %v99 = vld [vmem:[%s3 + $0x48] sm:$0xff]
    %v100 = vld [vmem:[%s3 + $0x50] sm:$0xff]
    %v101 = vld [vmem:[%s3 + $0x58] sm:$0xff]
    %v102 = vld [vmem:[%s3 + $0x60] sm:$0xff]
    %v103 = vld [vmem:[%s3 + $0x68] sm:$0xff]
    %v104 = vld [vmem:[%s3 + $0x70] sm:$0xff]
    %v105 = vld [vmem:[%s3 + $0x78] sm:$0xff]
    %v122 = vunpack.c.l.b16 %v90
    %v123 = vunpack.c.h.b16 %v90
    %v124 = vunpack.c.l.b16 %v91
    %v125 = vunpack.c.h.b16 %v91
    %v126 = vunpack.c.l.b16 %v92
    %v127 = vunpack.c.h.b16 %v92
    %v128 = vunpack.c.l.b16 %v93
    %v129 = vunpack.c.h.b16 %v93
    %v130 = vunpack.c.l.b16 %v94
    %v131 = vunpack.c.h.b16 %v94
    %v132 = vunpack.c.l.b16 %v95
    %v133 = vunpack.c.h.b16 %v95
    %v134 = vunpack.c.l.b16 %v96
    %v135 = vunpack.c.h.b16 %v96
    %v136 = vunpack.c.l.b16 %v97
    %v137 = vunpack.c.h.b16 %v97
    %v138 = vunpack.c.l.b16 %v98
    %v139 = vunpack.c.h.b16 %v98
    %v140 = vunpack.c.l.b16 %v99
    %v141 = vunpack.c.h.b16 %v99
    %v142 = vunpack.c.l.b16 %v100
    %v143 = vunpack.c.h.b16 %v100
    %v144 = vunpack.c.l.b16 %v101
    %v145 = vunpack.c.h.b16 %v101
    %v146 = vunpack.c.l.b16 %v102
    %v147 = vunpack.c.h.b16 %v102
    %v148 = vunpack.c.l.b16 %v103
    %v149 = vunpack.c.h.b16 %v103
    %v150 = vunpack.c.l.b16 %v104
    %v151 = vunpack.c.h.b16 %v104
    %v152 = vunpack.c.l.b16 %v105
    %v153 = vunpack.c.h.b16 %v105
    %v154 = vpack.c.b16 %v124, %v122
    %v155 = vpack.c.b16 %v125, %v123
    %v156 = vpack.c.b16 %v128, %v126
    %v157 = vpack.c.b16 %v129, %v127
    %v158 = vpack.c.b16 %v132, %v130
    %v159 = vpack.c.b16 %v133, %v131
    %v160 = vpack.c.b16 %v136, %v134
    %v161 = vpack.c.b16 %v137, %v135
    %v162 = vpack.c.b16 %v140, %v138
    %v163 = vpack.c.b16 %v141, %v139
    %v164 = vpack.c.b16 %v144, %v142
    %v165 = vpack.c.b16 %v145, %v143
    %v166 = vpack.c.b16 %v148, %v146
    %v167 = vpack.c.b16 %v149, %v147
    %v168 = vpack.c.b16 %v152, %v150
    %v169 = vpack.c.b16 %v153, %v151
    %186 = vmatpush.bf16.msra.mxu0 %v168
    %187 = vmatpush.bf16.msra.mxu0 %v166
    %188 = vmatpush.bf16.msra.mxu0 %v164
    %189 = vmatpush.bf16.msra.mxu0 %v162
    %190 = vmatpush.bf16.msra.mxu0 %v160
    %191 = vmatpush.bf16.msra.mxu0 %v158
    %192 = vmatpush.bf16.msra.mxu0 %v156
    %193 = vmatpush.bf16.msra.mxu0 %v154
    %194 = vmatmul.bf16.gmra.mxu0 %v89
    %v195 = vpop.f32.mrf.mxu0
    %v196 = vadd.f32 0.0, %v195
    %v197 = vpop.f32.mrf.mxu0
    %198 = vdwg.mxu0
    %199 = vmatpush.bf16.msra.mxu0 %v169
    %200 = vmatpush.bf16.msra.mxu0 %v167
    %201 = vmatpush.bf16.msra.mxu0 %v165
    %202 = vmatpush.bf16.msra.mxu0 %v163
    %203 = vmatpush.bf16.msra.mxu0 %v161
    %204 = vmatpush.bf16.msra.mxu0 %v159
    %205 = vmatpush.bf16.msra.mxu0 %v157
    %206 = vmatpush.bf16.msra.mxu0 %v155
    %207 = vmatmul.bf16.gmra.mxu0 %v89
    %v208 = vpop.f32.mrf.mxu0
    %v209 = vadd.f32 0.0, %v208
    %v210 = vpop.f32.mrf.mxu0
    %211 = vdwg.mxu0
    %v212 = vmax.f32 %v196, -8.0
    %v213 = vmax.f32 %v209, -8.0
    %v214 = vmin.f32 %v212, 8.0
    %v215 = vmin.f32 %v213, 8.0
    %v216 = vmul.f32 %v214, 0.17677669
    %v217 = vld [vmem:[%s1] sm:$0xff]
    %v218 = vld [vmem:[%s2] sm:$0xff]
    %v219 = vmul.f32 %v216, %v217
    %221 = vrot.lane.b32.xlu0 %v216, 112
    %v222 = vpop.permute.xlu0 %221
    %224 = vrot.lane.b32.xlu0 %v216, 16
    %v225 = vpop.permute.xlu0 %224
    %vm227 = vcmask 130048
    %v228 = vsel %vm227, %v222, %v225
    %vm229 = vcmask 261120
    %v230 = vsel %vm229, %v228, %v222
    %vm231 = vcmask 392192
    %v232 = vsel %vm231, %v230, %v225
    %vm233 = vcmask 523264
    %v234 = vsel %vm233, %v232, %v222
    %vm235 = vcmask 654336
    %v236 = vsel %vm235, %v234, %v225
    %vm237 = vcmask 785408
    %v238 = vsel %vm237, %v236, %v222
    %vm239 = vcmask 916480
    %v240 = vsel %vm239, %v238, %v225
    %v241 = vmul.f32 %v240, %v218
    %v242 = vadd.f32 %v219, %v241
    %v243 = vmul.f32 %v215, %v217
    %245 = vrot.lane.b32.xlu0 %v215, 112
    %v246 = vpop.permute.xlu0 %245
    %248 = vrot.lane.b32.xlu0 %v215, 16
    %v249 = vpop.permute.xlu0 %248
    %v251 = vsel %vm227, %v246, %v249
    %v252 = vsel %vm229, %v251, %v246
    %v253 = vsel %vm231, %v252, %v249
    %v254 = vmul.f32 %v253, %v218
    %v255 = vadd.f32 %v243, %v254
    %v256 = vpack.c.bf16 %v242, %v242
    %v257 = vpack.c.bf16 %v255, %v255
    %v258 = vpack.c.bf16 %v215, %v215
    %v259 = vlaneseq
    %v260 = vshrl.u32 %v259, 7
    %v261 = vlaneseq
    %v262 = vand.u32 %v261, 127
    %vm263 = vcmp.le.s32.totalorder %v262, %v260
    %v265 = vsel %vm229, %v256, 0
    %v268 = vsel %vm229, %v257, 0
    %270 = vmatpush.bf16.xpose.msra.mxu0 0
    %271 = vmatpush.bf16.xpose.msra.mxu0 0
    %272 = vmatpush.bf16.xpose.msra.mxu0 0
    %273 = vmatpush.bf16.xpose.msra.mxu0 0
    %274 = vmatpush.bf16.xpose.msra.mxu0 0
    %275 = vmatpush.bf16.xpose.msra.mxu0 0
    %276 = vmatpush.bf16.xpose.msra.mxu0 0
    %277 = vmatpush.bf16.xpose.msra.mxu0 %v268
    %278 = vmatmul.bf16.gmra.mxu0 %v265
    %v279 = vpop.f32.mrf.mxu0
    %v280 = vadd.f32 0.0, %v279
    %v281 = vpop.f32.mrf.mxu0
    %282 = vdwg.mxu0
    %v283 = vsel %vm263, %v280, -inf
    %vm284 = vcmask 64512
    %v285 = vsel %vm284, %v283, -inf
    %286 = vmax.xlane.f32.xlu0 %v285
    %v287 = vpop.xlane.xlu0 %286
    %v288 = vsub.f32 %v283, %v287
    %v289 = vmul.f32 %v288, 1.442695
    %v290 = vpow.pop %v289
    %v291 = vsel %vm284, %v290, 0.0
    %292 = vadd.xlane.f32.xlu0 %v291
    %v293 = vpop.xlane.xlu0 %292
    %v294 = vpack.c.bf16 %v290, %v290
    %v296 = vunpack.c.l.b16 %v258
    %v297 = vpack.c.b16 %v296, %v296
    %298 = vrot.lane.b32.xlu0 %v297, 64
    %v299 = vpop.permute.xlu0 %298
    %v301 = vsel %vm284, %v294, 0
    %vm303 = vcmask 1043456
    %v305 = vsel %vm303, %v299, 0
    %307 = vmatpush.bf16.msra.mxu0 0
    %308 = vmatpush.bf16.msra.mxu0 0
    %309 = vmatpush.bf16.msra.mxu0 0
    %310 = vmatpush.bf16.msra.mxu0 0
    %311 = vmatpush.bf16.msra.mxu0 0
    %312 = vmatpush.bf16.msra.mxu0 0
    %313 = vmatpush.bf16.msra.mxu0 0
    %314 = vmatpush.bf16.msra.mxu0 %v305
    %315 = vmatmul.bf16.gmra.mxu0 %v301
    %v316 = vpop.f32.mrf.mxu0
    %v317 = vadd.f32 0.0, %v316
    %v318 = vpop.f32.mrf.mxu0
    %319 = vdwg.mxu0
    %v320 = vrcp.pop %v293
    %v321 = vmul.f32 %v317, %v320
    %v323 = vunpack.c.l.b16 %v256
    %v324 = vpack.c.b16 %v323, %v323
    %325 = vrot.lane.b32.xlu0 %v324, 96
    %v326 = vpop.permute.xlu0 %325
    %v328 = vsel %vm229, %v326, 0
    %330 = vmatpush.bf16.xpose.msra.mxu0 0
    %331 = vmatpush.bf16.xpose.msra.mxu0 0
    %332 = vmatpush.bf16.xpose.msra.mxu0 0
    %333 = vmatpush.bf16.xpose.msra.mxu0 0
    %334 = vmatpush.bf16.xpose.msra.mxu0 0
    %335 = vmatpush.bf16.xpose.msra.mxu0 0
    %336 = vmatpush.bf16.xpose.msra.mxu0 0
    %337 = vmatpush.bf16.xpose.msra.mxu0 %v268
    %338 = vmatmul.bf16.gmra.mxu0 %v328
    %v339 = vpop.f32.mrf.mxu0
    %v340 = vadd.f32 0.0, %v339
    %v341 = vpop.f32.mrf.mxu0
    %342 = vdwg.mxu0
    %v343 = vsel %vm263, %v340, -inf
    %v344 = vsel %vm284, %v343, -inf
    %345 = vmax.xlane.f32.xlu0 %v344
    %v346 = vpop.xlane.xlu0 %345
    %v347 = vsub.f32 %v343, %v346
    %v348 = vmul.f32 %v347, 1.442695
    %v349 = vpow.pop %v348
    %v350 = vsel %vm284, %v349, 0.0
    %351 = vadd.xlane.f32.xlu0 %v350
    %v352 = vpop.xlane.xlu0 %351
    %v353 = vpack.c.bf16 %v349, %v349
    %v355 = vsel %vm284, %v353, 0
    %357 = vmatpush.bf16.msra.mxu0 0
    %358 = vmatpush.bf16.msra.mxu0 0
    %359 = vmatpush.bf16.msra.mxu0 0
    %360 = vmatpush.bf16.msra.mxu0 0
    %361 = vmatpush.bf16.msra.mxu0 0
    %362 = vmatpush.bf16.msra.mxu0 0
    %363 = vmatpush.bf16.msra.mxu0 0
    %364 = vmatpush.bf16.msra.mxu0 %v305
    %365 = vmatmul.bf16.gmra.mxu0 %v355
    %v366 = vpop.f32.mrf.mxu0
    %v367 = vadd.f32 0.0, %v366
    %v368 = vpop.f32.mrf.mxu0
    %369 = vdwg.mxu0
    %v370 = vrcp.pop %v352
    %v371 = vmul.f32 %v367, %v370
    %372 = vrot.lane.b32.xlu0 %v324, 64
    %v373 = vpop.permute.xlu0 %372
    %v375 = vunpack.c.l.b16 %v257
    %v376 = vpack.c.b16 %v375, %v375
    %377 = vrot.lane.b32.xlu0 %v376, 96
    %v378 = vpop.permute.xlu0 %377
    %v380 = vsel %vm229, %v373, 0
    %v383 = vsel %vm229, %v378, 0
    %385 = vmatpush.bf16.xpose.msra.mxu0 0
    %386 = vmatpush.bf16.xpose.msra.mxu0 0
    %387 = vmatpush.bf16.xpose.msra.mxu0 0
    %388 = vmatpush.bf16.xpose.msra.mxu0 0
    %389 = vmatpush.bf16.xpose.msra.mxu0 0
    %390 = vmatpush.bf16.xpose.msra.mxu0 0
    %391 = vmatpush.bf16.xpose.msra.mxu0 0
    %392 = vmatpush.bf16.xpose.msra.mxu0 %v383
    %393 = vmatmul.bf16.gmra.mxu0 %v380
    %v394 = vpop.f32.mrf.mxu0
    %v395 = vadd.f32 0.0, %v394
    %v396 = vpop.f32.mrf.mxu0
    %397 = vdwg.mxu0
    %v398 = vsel %vm263, %v395, -inf
    %v399 = vsel %vm284, %v398, -inf
    %400 = vmax.xlane.f32.xlu0 %v399
    %v401 = vpop.xlane.xlu0 %400
    %v402 = vsub.f32 %v398, %v401
    %v403 = vmul.f32 %v402, 1.442695
    %v404 = vpow.pop %v403
    %v405 = vsel %vm284, %v404, 0.0
    %406 = vadd.xlane.f32.xlu0 %v405
    %v407 = vpop.xlane.xlu0 %406
    %v408 = vpack.c.bf16 %v404, %v404
    %409 = vrot.lane.b32.xlu0 %v297, 32
    %v410 = vpop.permute.xlu0 %409
    %v412 = vsel %vm284, %v408, 0
    %v415 = vsel %vm303, %v410, 0
    %417 = vmatpush.bf16.msra.mxu0 0
    %418 = vmatpush.bf16.msra.mxu0 0
    %419 = vmatpush.bf16.msra.mxu0 0
    %420 = vmatpush.bf16.msra.mxu0 0
    %421 = vmatpush.bf16.msra.mxu0 0
    %422 = vmatpush.bf16.msra.mxu0 0
    %423 = vmatpush.bf16.msra.mxu0 0
    %424 = vmatpush.bf16.msra.mxu0 %v415
    %425 = vmatmul.bf16.gmra.mxu0 %v412
    %v426 = vpop.f32.mrf.mxu0
    %v427 = vadd.f32 0.0, %v426
    %v428 = vpop.f32.mrf.mxu0
    %429 = vdwg.mxu0
    %v430 = vrcp.pop %v407
    %v431 = vmul.f32 %v427, %v430
    %432 = vrot.lane.b32.xlu0 %v324, 32
    %v433 = vpop.permute.xlu0 %432
    %v435 = vsel %vm229, %v433, 0
    %437 = vmatpush.bf16.xpose.msra.mxu0 0
    %438 = vmatpush.bf16.xpose.msra.mxu0 0
    %439 = vmatpush.bf16.xpose.msra.mxu0 0
    %440 = vmatpush.bf16.xpose.msra.mxu0 0
    %441 = vmatpush.bf16.xpose.msra.mxu0 0
    %442 = vmatpush.bf16.xpose.msra.mxu0 0
    %443 = vmatpush.bf16.xpose.msra.mxu0 0
    %444 = vmatpush.bf16.xpose.msra.mxu0 %v383
    %445 = vmatmul.bf16.gmra.mxu0 %v435
    %v446 = vpop.f32.mrf.mxu0
    %v447 = vadd.f32 0.0, %v446
    %v448 = vpop.f32.mrf.mxu0
    %449 = vdwg.mxu0
    %v450 = vsel %vm263, %v447, -inf
    %v451 = vsel %vm284, %v450, -inf
    %452 = vmax.xlane.f32.xlu0 %v451
    %v453 = vpop.xlane.xlu0 %452
    %v454 = vsub.f32 %v450, %v453
    %v455 = vmul.f32 %v454, 1.442695
    %v456 = vpow.pop %v455
    %v457 = vsel %vm284, %v456, 0.0
    %458 = vadd.xlane.f32.xlu0 %v457
    %v459 = vpop.xlane.xlu0 %458
    %v460 = vpack.c.bf16 %v456, %v456
    %v462 = vsel %vm284, %v460, 0
    %464 = vmatpush.bf16.msra.mxu0 0
    %465 = vmatpush.bf16.msra.mxu0 0
    %466 = vmatpush.bf16.msra.mxu0 0
    %467 = vmatpush.bf16.msra.mxu0 0
    %468 = vmatpush.bf16.msra.mxu0 0
    %469 = vmatpush.bf16.msra.mxu0 0
    %470 = vmatpush.bf16.msra.mxu0 0
    %471 = vmatpush.bf16.msra.mxu0 %v415
    %472 = vmatmul.bf16.gmra.mxu0 %v462
    %v473 = vpop.f32.mrf.mxu0
    %v474 = vadd.f32 0.0, %v473
    %v475 = vpop.f32.mrf.mxu0
    %476 = vdwg.mxu0
    %v477 = vrcp.pop %v459
    %v478 = vmul.f32 %v474, %v477
    %480 = vrot.lane.b32.xlu0 %v371, 32
    %v481 = vpop.permute.xlu0 %480
    %484 = vrot.lane.b32.xlu0 %v431, 64
    %v485 = vpop.permute.xlu0 %484
    %488 = vrot.lane.b32.xlu0 %v478, 96
    %v489 = vpop.permute.xlu0 %488
    %v491 = vsel %vm229, %v321, %v481
    %v492 = vsel %vm233, %v491, %v485
    %v493 = vsel %vm237, %v492, %v489
    %v494 = vpack.c.bf16 %v493, %v493
    %v495 = vld [vmem:[%s4] sm:$0xf]
    %v496 = vld [vmem:[%s4 + $0x4] sm:$0xf]
    %v497 = vld [vmem:[%s4 + $0x8] sm:$0xf]
    %v498 = vld [vmem:[%s4 + $0xc] sm:$0xf]
    %v499 = vld [vmem:[%s4 + $0x10] sm:$0xf]
    %v500 = vld [vmem:[%s4 + $0x14] sm:$0xf]
    %v501 = vld [vmem:[%s4 + $0x18] sm:$0xf]
    %v502 = vld [vmem:[%s4 + $0x1c] sm:$0xf]
    %v503 = vld [vmem:[%s4 + $0x20] sm:$0xf]
    %v504 = vld [vmem:[%s4 + $0x24] sm:$0xf]
    %v505 = vld [vmem:[%s4 + $0x28] sm:$0xf]
    %v506 = vld [vmem:[%s4 + $0x2c] sm:$0xf]
    %v507 = vld [vmem:[%s4 + $0x30] sm:$0xf]
    %v508 = vld [vmem:[%s4 + $0x34] sm:$0xf]
    %v509 = vld [vmem:[%s4 + $0x38] sm:$0xf]
    %v510 = vld [vmem:[%s4 + $0x3c] sm:$0xf]
    %v527 = vunpack.c.l.b16 %v495
    %v528 = vunpack.c.l.b16 %v496
    %v529 = vunpack.c.l.b16 %v497
    %v530 = vunpack.c.l.b16 %v498
    %v531 = vunpack.c.l.b16 %v499
    %v532 = vunpack.c.l.b16 %v500
    %v533 = vunpack.c.l.b16 %v501
    %v534 = vunpack.c.l.b16 %v502
    %v535 = vunpack.c.l.b16 %v503
    %v536 = vunpack.c.l.b16 %v504
    %v537 = vunpack.c.l.b16 %v505
    %v538 = vunpack.c.l.b16 %v506
    %v539 = vunpack.c.l.b16 %v507
    %v540 = vunpack.c.l.b16 %v508
    %v541 = vunpack.c.l.b16 %v509
    %v542 = vunpack.c.l.b16 %v510
    %v543 = vpack.c.b16 %v528, %v527
    %v544 = vpack.c.b16 %v530, %v529
    %v545 = vpack.c.b16 %v532, %v531
    %v546 = vpack.c.b16 %v534, %v533
    %v547 = vpack.c.b16 %v536, %v535
    %v548 = vpack.c.b16 %v538, %v537
    %v549 = vpack.c.b16 %v540, %v539
    %v550 = vpack.c.b16 %v542, %v541
    %559 = vmatpush.bf16.msra.mxu0 %v550
    %560 = vmatpush.bf16.msra.mxu0 %v549
    %561 = vmatpush.bf16.msra.mxu0 %v548
    %562 = vmatpush.bf16.msra.mxu0 %v547
    %563 = vmatpush.bf16.msra.mxu0 %v546
    %564 = vmatpush.bf16.msra.mxu0 %v545
    %565 = vmatpush.bf16.msra.mxu0 %v544
    %566 = vmatpush.bf16.msra.mxu0 %v543
    %567 = vmatmul.bf16.gmra.mxu0 %v494
    %v568 = vpop.f32.mrf.mxu0
    %v569 = vadd.f32 0.0, %v568
    %v570 = vpop.f32.mrf.mxu0
    %571 = vdwg.mxu0
    %v572 = vadd.f32 %v51, %v569
    %573 = vst [vmem:[#allocation6] sm:$0xff] %v572
    %574 = vadd.xlane.f32.xlu0 %v572
    %v575 = vpop.xlane.xlu0 %574
    %v576 = vmul.f32 %v575, %v60
    %v577 = vsub.f32 %v572, %v576
    %v578 = vmul.f32 %v577, %v577
    %579 = vadd.xlane.f32.xlu0 %v578
    %v580 = vpop.xlane.xlu0 %579
    %v581 = vmul.f32 %v580, %v60
    %v582 = vadd.f32 %v581, 1e-05
    %v583 = vrsqrt.pop %v582
    %v584 = vmul.f32 %v583, %v582
    %v585 = vmul.f32 %v584, %v583
    %v586 = vmul.f32 0.5, %v585
    %v587 = vsub.f32 1.5, %v586
    %v588 = vmul.f32 %v583, %v587
    %vm589 = vweird.f32 %v582
    %vm590 = vweird.f32 %v583
    %vm591 = vmor %vm589, %vm590
    %v592 = vsel %vm591, %v583, %v588
    %v593 = vmul.f32 %v577, %v592
    %v594 = vld [vmem:[%s7] sm:$0x1]
    %v596 = vperm.slane %v594, 0
    %v598 = vmul.f32 %v593, %v596
    %v599 = vld [vmem:[%s8] sm:$0x1]
    %v601 = vperm.slane %v599, 0
    %v603 = vadd.f32 %v598, %v601
    %604 = vst [vmem:[#allocation5] sm:$0xff] %v603
    // Predicated region
    $region42: #{dbrx_fused_norm_attention.1} parent=1 // pred_check
      _
    $region43: #{dbrx_fused_norm_attention.1} parent=1 // pred_check_branch
      %606 = sbr.rel (0) target = $region45
    $region44: #{dbrx_fused_norm_attention.1} parent=1 // pred_region
      %608 = vsyncadd [#allocation4], 0
      %s610 = sshll.u32 [#allocation5], 4
      %s611 = int_to_ptr.vmem [resolvable:$true] %s610
      %s612 = sshll.u32 %s9, 4
      %s613 = int_to_ptr.hbm [resolvable:$true] %s612
      %615 = dma.vmem_to_hbm [thread:$0]  %s611, 128, %s613, [#allocation4]
    $region45: #{dbrx_fused_norm_attention.1} parent=1 // pred_fallthru
      _
    // Predicated region
    $region46: #{dbrx_fused_norm_attention.1} parent=1 // pred_check
      _
    $region47: #{dbrx_fused_norm_attention.1} parent=1 // pred_check_branch
      %617 = sbr.rel (0) target = $region49
    $region48: #{dbrx_fused_norm_attention.1} parent=1 // pred_region
      %619 = vsyncadd [#allocation7], 0
      %s621 = sshll.u32 [#allocation6], 4
      %s622 = int_to_ptr.vmem [resolvable:$true] %s621
      %s623 = sshll.u32 %s10, 4
      %s624 = int_to_ptr.hbm [resolvable:$true] %s623
      %626 = dma.vmem_to_hbm [thread:$0]  %s622, 128, %s624, [#allocation7]
    $region49: #{dbrx_fused_norm_attention.1} parent=1 // pred_fallthru
      _
    // Predicated region
    $region50: #{dbrx_fused_norm_attention.1} parent=1 // pred_check
      _
    $region51: #{dbrx_fused_norm_attention.1} parent=1 // pred_check_branch
      %628 = sbr.rel (0) target = $region53
    $region52: #{dbrx_fused_norm_attention.1} parent=1 // pred_region
      %630 = dma.done [#allocation4], 128
    $region53: #{dbrx_fused_norm_attention.1} parent=1 // pred_fallthru
      _
    // Predicated region
    $region54: #{dbrx_fused_norm_attention.1} parent=1 // pred_check
      _
    $region55: #{dbrx_fused_norm_attention.1} parent=1 // pred_check_branch
      %632 = sbr.rel (0) target = $region57
    $region56: #{dbrx_fused_norm_attention.1} parent=1 // pred_region
      %634 = dma.done [#allocation7], 128
    $region57: #{dbrx_fused_norm_attention.1} parent=1 // pred_fallthru
      _
    %635 = vsyncpa [#allocation3], 1
    %636 = vsyncpa [#allocation4], 1
    %637 = vsyncpa [#allocation7], 1

</llo_original>
